<compile_context>
chip_gen: v5e
topology: v5e:2x2
jax: 0.10.0
libtpu: 0.0.40
codegen_flags: <defaults>
</compile_context>

<pallas_src>
import math
from functools import partial

import jax
import jax.numpy as jnp
from jax import lax
from jax.experimental import pallas as pl
from jax.experimental.pallas import tpu as pltpu


def _round_up(x, m):
    return ((x + m - 1) // m) * m


# ---------------------------------------------------------------------------
# Kernel
# ---------------------------------------------------------------------------
def _cross_mha_kernel(y_ref, z_ref, wq_ref, wkv_ref, wo_ref, bias_ref, out_ref,
                      *, batch_block, s_dec, s_enc, num_heads, kq_dim, out_dim,
                      out_dim_padded, seg_hk, seg_ho, compute_dtype):
    """One grid step == `batch_block` batch elements; all heads handled in-kernel."""
    hk = num_heads * kq_dim
    ho = num_heads * out_dim
    # Static, 128-lane aligned offsets into the consolidated bias vector:
    #   [ bq (seg_hk) | bk|bv merged (seg_hk + seg_ho) | bo (out_pad) ]
    o_q = 0
    o_kv = seg_hk
    o_o = seg_hk + seg_hk + seg_ho

    y = y_ref[...]                                   # (Bb*S_dec, dec_dim)
    z = z_ref[...]                                   # (Bb*S_enc, enc_dim)

    bq = bias_ref[:, o_q:o_q + hk]                   # (1, H*kq)        f32
    bkv = bias_ref[:, o_kv:o_kv + seg_hk + seg_ho]   # (1, seg_hk+seg_ho) f32
    bo = bias_ref[:, o_o:o_o + out_dim_padded]       # (1, out_pad)     f32

    # Q for all heads (1 matmul) and fused K|V for all heads (1 matmul, one
    # weight DMA). 1/sqrt(kq) already folded into Wq/bq. f32 accumulation.
    q_all = jnp.dot(y, wq_ref[...], preferred_element_type=jnp.float32) + bq
    kv_all = jnp.dot(z, wkv_ref[...], preferred_element_type=jnp.float32) + bkv

    # Cast once (hoisted out of the head loop); split K/V at 128-aligned lanes.
    q_c = q_all.astype(compute_dtype)                          # (Bb*S_dec, H*kq)
    k_c = kv_all[:, :hk].astype(compute_dtype)                 # (Bb*S_enc, H*kq)
    v_c = kv_all[:, seg_hk:seg_hk + ho].astype(compute_dtype)  # (Bb*S_enc, H*out)

    # Per-(batch, head) attention; statically unrolled (both counts are small).
    # Per-head outputs are concatenated so the concat + output Linear becomes a
    # single (rows, H*out) @ (H*out, out_pad) matmul below.
    row_blocks = []
    for b in range(batch_block):
        qb = q_c[b * s_dec:(b + 1) * s_dec, :]
        kb = k_c[b * s_enc:(b + 1) * s_enc, :]
        vb = v_c[b * s_enc:(b + 1) * s_enc, :]
        yh_list = []
        for h in range(num_heads):
            qh = qb[:, h * kq_dim:(h + 1) * kq_dim]
            kh = kb[:, h * kq_dim:(h + 1) * kq_dim]
            vh = vb[:, h * out_dim:(h + 1) * out_dim]

            # q @ k^T by contracting the last dims of both operands -- the MXU
            # consumes the RHS-transposed contraction natively (no k.T).
            logits = lax.dot_general(
                qh, kh, dimension_numbers=(((1,), (1,)), ((), ())),
                preferred_element_type=jnp.float32)      # (S_dec, S_enc) f32

            # Numerically-stable softmax; reciprocal goes to the EUP slot.
            logits = logits - jnp.max(logits, axis=-1, keepdims=True)
            p = jnp.exp(logits)
            p = p * pl.reciprocal(jnp.sum(p, axis=-1, keepdims=True),
                                  approx=True)
            # Note: p is quantized to compute_dtype for P@V; fine at small
            # S_enc — keep p in f32 here if S_enc grows large in bf16 mode.
            yh = jnp.dot(p.astype(compute_dtype), vh,
                         preferred_element_type=jnp.float32)  # (S_dec, out)
            yh_list.append(yh)
        row_blocks.append(jnp.concatenate(yh_list, axis=-1))   # (S_dec, H*out)

    Y = row_blocks[0] if batch_block == 1 else jnp.concatenate(row_blocks, 0)

    # Single output projection for all heads and all blocked batch rows.
    out = jnp.dot(Y.astype(compute_dtype), wo_ref[...],
                  preferred_element_type=jnp.float32) + bo     # (rows, out_pad)

    # Single lane-dense store per grid step (out_pad is a 128 multiple).
    out_ref[...] = out.astype(out_ref.dtype)


# ---------------------------------------------------------------------------
# One-time parameter packing (constant transform, done once, not per call)
# ---------------------------------------------------------------------------
def pack_cross_mha_params(params):
    """Per-head PyTorch-style params -> stacked/padded layout for the kernel.

    Input layout (weights stored transposed, i.e. (in_features, out_features)):
      wq (H, dec, kq)   bq (H, 1, kq)
      wk (H, enc, kq)   bk (H, 1, kq)
      wv (H, enc, out)  bv (H, 1, out)
      wo (H, out, out)  bo (1, out)
    """
    wq, bq, wk, bk, wv, bv, wo, bo = params
    H, dec_dim, kq_dim = wq.shape
    enc_dim = wk.shape[1]
    out_dim = wv.shape[-1]
    out_pad = _round_up(out_dim, 128)           # lane-dense output width
    seg_hk = _round_up(H * kq_dim, 128)         # 128-aligned K segment width
    seg_ho = _round_up(H * out_dim, 128)        # 128-aligned V segment width
    scale = 1.0 / math.sqrt(kq_dim)             # derived from the weight shape

    # Stack per-head weights along the feature axis; fold the attention scale
    # into Wq / bq (in f32, before any bf16 cast).
    wq_all = (wq * scale).transpose(1, 0, 2).reshape(dec_dim, H * kq_dim)
    wk_all = wk.transpose(1, 0, 2).reshape(enc_dim, H * kq_dim)
    wv_all = wv.transpose(1, 0, 2).reshape(enc_dim, H * out_dim)

    # Fused K/V weight: [Wk | Wv], each segment zero-padded to a 128 boundary
    # so the kernel splits with 128-aligned static lane slices. One DMA total.
    wkv_all = jnp.concatenate([
        jnp.pad(wk_all, ((0, 0), (0, seg_hk - H * kq_dim))),
        jnp.pad(wv_all, ((0, 0), (0, seg_ho - H * out_dim))),
    ], axis=1)

    wo_all = jnp.pad(wo.reshape(H * out_dim, out_dim),
                     ((0, 0), (0, out_pad - out_dim)))

    # One consolidated bias vector (single DMA); each segment 128-lane aligned,
    # with bk/bv merged to mirror the fused K/V weight.
    def pad_to(x, w):
        return jnp.pad(x, ((0, 0), (0, w - x.shape[1])))

    bias_all = jnp.concatenate([
        pad_to((bq * scale).reshape(1, H * kq_dim), seg_hk),
        pad_to(bk.reshape(1, H * kq_dim), seg_hk),
        pad_to(bv.reshape(1, H * out_dim), seg_ho),
        pad_to(bo.reshape(1, out_dim), out_pad),
    ], axis=1).astype(jnp.float32)

    return (wq_all, wkv_all, wo_all, bias_all)


# ---------------------------------------------------------------------------
# Wrapper
# ---------------------------------------------------------------------------
def cross_mha(z, y, packed, *, num_heads, compute_dtype=jnp.bfloat16,
              batch_block=1):
    """batch_block: batch elements packed per grid step.
    v5e/v6e (1 TC): use batch_block=B.  v7x (2 TCs): keep B/batch_block >= 2."""
    wq_all, wkv_all, wo_all, bias_all = packed
    B, S_enc, enc_dim = z.shape
    _, S_dec, dec_dim = y.shape
    kq_dim = wq_all.shape[1] // num_heads
    out_dim = wo_all.shape[0] // num_heads
    out_pad = wo_all.shape[1]
    seg_hk = _round_up(num_heads * kq_dim, 128)
    seg_ho = _round_up(num_heads * out_dim, 128)

    assert B % batch_block == 0, "batch_block must divide B"
    n_blocks = B // batch_block

    cd = jnp.dtype(compute_dtype)
    # Present inputs/outputs as lane-dense 2-D slabs (wrapper-side reshape is
    # free layout plumbing); the kernel never reshapes.
    y2 = y.reshape(B * S_dec, dec_dim).astype(cd)
    z2 = z.reshape(B * S_enc, enc_dim).astype(cd)
    wq_c = wq_all.astype(cd)
    wkv_c = wkv_all.astype(cd)
    wo_c = wo_all.astype(cd)

    kernel = partial(_cross_mha_kernel,
                     batch_block=batch_block, s_dec=S_dec, s_enc=S_enc,
                     num_heads=num_heads, kq_dim=kq_dim, out_dim=out_dim,
                     out_dim_padded=out_pad, seg_hk=seg_hk, seg_ho=seg_ho,
                     compute_dtype=cd)

    out2 = pl.pallas_call(
        kernel,
        out_shape=jax.ShapeDtypeStruct((B * S_dec, out_pad), jnp.float32),
        grid=(n_blocks,),
        in_specs=[
            pl.BlockSpec((batch_block * S_dec, dec_dim), lambda i: (i, 0)),  # y
            pl.BlockSpec((batch_block * S_enc, enc_dim), lambda i: (i, 0)),  # z
            pl.BlockSpec(wq_c.shape, lambda i: (0, 0)),    # Wq  (stacked)
            pl.BlockSpec(wkv_c.shape, lambda i: (0, 0)),   # Wk|Wv (fused)
            pl.BlockSpec(wo_c.shape, lambda i: (0, 0)),    # Wout (stacked, padded)
            pl.BlockSpec(bias_all.shape, lambda i: (0, 0)),  # all biases
        ],
        out_specs=pl.BlockSpec((batch_block * S_dec, out_pad), lambda i: (i, 0)),
        compiler_params=pltpu.CompilerParams(
            dimension_semantics=("parallel",)),
    )(y2, z2, wq_c, wkv_c, wo_c, bias_all)

    # Drop the zero lane-padding outside the kernel (layout plumbing only).
    return out2.reshape(B, S_dec, out_pad)[..., :out_dim]


# ---------------------------------------------------------------------------
# Pure-JAX reference (matches the PyTorch module semantics)
# ---------------------------------------------------------------------------
def cross_mha_reference(z, y, params, *, kq_dimension):
    (wq, bq, wk, bk, wv, bv, wo, bo) = params
    q = jnp.einsum('bsd,hdk->hbsk', y, wq) + bq[:, None]          # (H,B,Sd,K)
    k = jnp.einsum('bsd,hdk->hbsk', z, wk) + bk[:, None]          # (H,B,Se,K)
    v = jnp.einsum('bsd,hdo->hbso', z, wv) + bv[:, None]          # (H,B,Se,O)
    logits = jnp.einsum('hbqk,hbek->hbqe', q, k) / math.sqrt(kq_dimension)
    attn = jax.nn.softmax(logits, axis=-1)
    yh = jnp.einsum('hbqe,hbeo->hbqo', attn, v)                   # (H,B,Sd,O)
    out = jnp.einsum('hbqo,hop->bqp', yh, wo) + bo[0]
    return out


def init_params(key, *, enc_inp_dim, dec_inp_dim, out_dimension, kq_dimension,
                num_heads):
    ks = jax.random.split(key, 8)

    def u(k, shape, fan_in):
        bound = 1.0 / math.sqrt(fan_in)
        return jax.random.uniform(k, shape, jnp.float32, -bound, bound)

    H = num_heads
    # Weights stored transposed: (in_features, out_features).
    wq = u(ks[0], (H, dec_inp_dim, kq_dimension), dec_inp_dim)
    bq = u(ks[1], (H, 1, kq_dimension), dec_inp_dim)
    wk = u(ks[2], (H, enc_inp_dim, kq_dimension), enc_inp_dim)
    bk = u(ks[3], (H, 1, kq_dimension), enc_inp_dim)
    wv = u(ks[4], (H, enc_inp_dim, out_dimension), enc_inp_dim)
    bv = u(ks[5], (H, 1, out_dimension), enc_inp_dim)
    # Output projection: torch weight (out, H*out); transposed -> (H*out, out),
    # reshaped per-head -> (H, out, out).
    wo = u(ks[6], (H, out_dimension, out_dimension), H * out_dimension)
    bo = u(ks[7], (1, out_dimension), H * out_dimension)
    return (wq, bq, wk, bk, wv, bv, wo, bo)


if __name__ == "__main__":
    B = 2
    S_enc = 16
    S_dec = 8
    enc_inp_dim = 32
    dec_inp_dim = 24
    out_dimension = 16
    kq_dimension = 16
    num_heads = 4

    root = jax.random.PRNGKey(0)
    k_z, k_y, k_p = jax.random.split(root, 3)
    z = jax.random.normal(k_z, (B, S_enc, enc_inp_dim), jnp.float32)
    y = jax.random.normal(k_y, (B, S_dec, dec_inp_dim), jnp.float32)
    params = init_params(k_p,
                         enc_inp_dim=enc_inp_dim,
                         dec_inp_dim=dec_inp_dim,
                         out_dimension=out_dimension,
                         kq_dimension=kq_dimension,
                         num_heads=num_heads)

    # One-time constant parameter packing (stack/scale/pad/fuse/consolidate).
    packed = pack_cross_mha_params(params)

    run = jax.jit(cross_mha,
                  static_argnames=("num_heads", "compute_dtype", "batch_block"))

    ref = jax.block_until_ready(
        cross_mha_reference(z, y, params, kq_dimension=kq_dimension))

    # f32 path, batch_block=1 (grid=(2,): both v7x TensorCores busy). Only
    # deliberate approximation is the EUP approx reciprocal in the softmax.
    out = run(z, y, packed, num_heads=num_heads,
              compute_dtype=jnp.float32, batch_block=1)
    out = jax.block_until_ready(out)
    assert out.shape == (B, S_dec, out_dimension)
    assert jnp.allclose(out, ref, atol=5e-3, rtol=5e-3), float(
        jnp.max(jnp.abs(out - ref)))

    # f32 path, whole batch packed into one grid step (v5e/v6e single-TC mode).
    out_packed = run(z, y, packed, num_heads=num_heads,
                     compute_dtype=jnp.float32, batch_block=B)
    out_packed = jax.block_until_ready(out_packed)
    assert jnp.allclose(out_packed, ref, atol=5e-3, rtol=5e-3), float(
        jnp.max(jnp.abs(out_packed - ref)))

    # bf16 matmul path (default; native MXU path on v6e/v7x), f32 accumulation.
    out_bf16 = run(z, y, packed, num_heads=num_heads,
                   compute_dtype=jnp.bfloat16, batch_block=B)
    out_bf16 = jax.block_until_ready(out_bf16)
    assert out_bf16.shape == (B, S_dec, out_dimension)
    assert jnp.allclose(out_bf16, ref, atol=5e-2, rtol=5e-2), float(
        jnp.max(jnp.abs(out_bf16 - ref)))

    print("KERNEL_OK")
</pallas_src>

<mosaic_0001>
module attributes {stable_mosaic.version = 11 : i64} {
  func.func @_cross_mha_kernel(%arg0: i32, %arg1: memref<8x24xf32, #tpu.memory_space<vmem>>, %arg2: memref<16x32xf32, #tpu.memory_space<vmem>>, %arg3: memref<24x64xf32, #tpu.memory_space<vmem>>, %arg4: memref<32x256xf32, #tpu.memory_space<vmem>>, %arg5: memref<64x128xf32, #tpu.memory_space<vmem>>, %arg6: memref<1x512xf32, #tpu.memory_space<vmem>>, %arg7: memref<8x128xf32, #tpu.memory_space<vmem>>) attributes {dimension_semantics = [#tpu.dimension_semantics<parallel>], iteration_bounds = array<i64: 2>, scalar_prefetch = 0 : i64, scratch_operands = 0 : i64, tpu.core_type = #tpu.core_type<tc>, window_params = [{transform_indices = @transform_0, window_bounds = array<i64: 8, 24>}, {transform_indices = @transform_1, window_bounds = array<i64: 16, 32>}, {pipeline_mode = #tpu.pipeline_mode<synchronous>, transform_indices = @transform_2, window_bounds = array<i64: 24, 64>}, {pipeline_mode = #tpu.pipeline_mode<synchronous>, transform_indices = @transform_3, window_bounds = array<i64: 32, 256>}, {pipeline_mode = #tpu.pipeline_mode<synchronous>, transform_indices = @transform_4, window_bounds = array<i64: 64, 128>}, {pipeline_mode = #tpu.pipeline_mode<synchronous>, transform_indices = @transform_5, window_bounds = array<i64: 1, 512>}, {transform_indices = @transform_6, window_bounds = array<i64: 8, 128>}]} {
    %c0 = arith.constant 0 : index
    %c0_0 = arith.constant 0 : index
    %0 = vector.load %arg1[%c0, %c0_0] : memref<8x24xf32, #tpu.memory_space<vmem>>, vector<8x24xf32>
    %c0_1 = arith.constant 0 : index
    %c0_2 = arith.constant 0 : index
    %1 = vector.load %arg2[%c0_1, %c0_2] : memref<16x32xf32, #tpu.memory_space<vmem>>, vector<16x32xf32>
    %c0_3 = arith.constant 0 : index
    %c0_4 = arith.constant 0 : index
    %2 = vector.load %arg6[%c0_3, %c0_4] : memref<1x512xf32, #tpu.memory_space<vmem>>, vector<1x64xf32>
    %c0_5 = arith.constant 0 : index
    %c128 = arith.constant 128 : index
    %3 = vector.load %arg6[%c0_5, %c128] : memref<1x512xf32, #tpu.memory_space<vmem>>, vector<1x256xf32>
    %c0_6 = arith.constant 0 : index
    %c384 = arith.constant 384 : index
    %4 = vector.load %arg6[%c0_6, %c384] : memref<1x512xf32, #tpu.memory_space<vmem>>, vector<1x128xf32>
    %c0_7 = arith.constant 0 : index
    %c0_8 = arith.constant 0 : index
    %5 = vector.load %arg3[%c0_7, %c0_8] : memref<24x64xf32, #tpu.memory_space<vmem>>, vector<24x64xf32>
    %cst = arith.constant dense<0.000000e+00> : vector<8x64xf32>
    %6 = tpu.matmul %0, %5, %cst {dimension_numbers = #tpu.dot_dimension_numbers<[1], [0], [0], [1], [0, 0, 1, 1], [], []>} : vector<8x24xf32>, vector<24x64xf32>, vector<8x64xf32> -> vector<8x64xf32>
    %7 = vector.broadcast %2 : vector<1x64xf32> to vector<8x64xf32>
    %8 = arith.addf %6, %7 : vector<8x64xf32>
    %c0_9 = arith.constant 0 : index
    %c0_10 = arith.constant 0 : index
    %9 = vector.load %arg4[%c0_9, %c0_10] : memref<32x256xf32, #tpu.memory_space<vmem>>, vector<32x256xf32>
    %cst_11 = arith.constant dense<0.000000e+00> : vector<16x256xf32>
    %10 = tpu.matmul %1, %9, %cst_11 {dimension_numbers = #tpu.dot_dimension_numbers<[1], [0], [0], [1], [0, 0, 1, 1], [], []>} : vector<16x32xf32>, vector<32x256xf32>, vector<16x256xf32> -> vector<16x256xf32>
    %11 = vector.broadcast %3 : vector<1x256xf32> to vector<16x256xf32>
    %12 = arith.addf %10, %11 : vector<16x256xf32>
    %13 = vector.extract_strided_slice %12 {offsets = [0, 0], sizes = [16, 64], strides = [1, 1]} : vector<16x256xf32> to vector<16x64xf32>
    %14 = vector.extract_strided_slice %12 {offsets = [0, 128], sizes = [16, 64], strides = [1, 1]} : vector<16x256xf32> to vector<16x64xf32>
    %15 = vector.extract_strided_slice %8 {offsets = [0, 0], sizes = [8, 16], strides = [1, 1]} : vector<8x64xf32> to vector<8x16xf32>
    %16 = vector.extract_strided_slice %13 {offsets = [0, 0], sizes = [16, 16], strides = [1, 1]} : vector<16x64xf32> to vector<16x16xf32>
    %17 = vector.extract_strided_slice %14 {offsets = [0, 0], sizes = [16, 16], strides = [1, 1]} : vector<16x64xf32> to vector<16x16xf32>
    %cst_12 = arith.constant dense<0.000000e+00> : vector<8x16xf32>
    %18 = tpu.matmul %15, %16, %cst_12 {dimension_numbers = #tpu.dot_dimension_numbers<[1], [1], [0], [0], [0, 0, 1, 0], [], []>} : vector<8x16xf32>, vector<16x16xf32>, vector<8x16xf32> -> vector<8x16xf32>
    %cst_13 = arith.constant dense<0xFF800000> : vector<8xf32>
    %19 = vector.multi_reduction <maximumf>, %18, %cst_13 [1] : vector<8x16xf32> to vector<8xf32>
    %20 = vector.shape_cast %19 : vector<8xf32> to vector<8x1xf32>
    %21 = vector.broadcast %20 : vector<8x1xf32> to vector<8x16xf32>
    %22 = arith.subf %18, %21 : vector<8x16xf32>
    %23 = math.exp %22 : vector<8x16xf32>
    %cst_14 = arith.constant dense<0.000000e+00> : vector<8xf32>
    %24 = vector.multi_reduction <add>, %23, %cst_14 [1] : vector<8x16xf32> to vector<8xf32>
    %25 = vector.shape_cast %24 : vector<8xf32> to vector<8x1xf32>
    %26 = tpu.reciprocal %25 {approx = true} : vector<8x1xf32> -> vector<8x1xf32>
    %27 = vector.broadcast %26 : vector<8x1xf32> to vector<8x16xf32>
    %28 = arith.mulf %23, %27 : vector<8x16xf32>
    %cst_15 = arith.constant dense<0.000000e+00> : vector<8x16xf32>
    %29 = tpu.matmul %28, %17, %cst_15 {dimension_numbers = #tpu.dot_dimension_numbers<[1], [0], [0], [1], [0, 0, 1, 1], [], []>} : vector<8x16xf32>, vector<16x16xf32>, vector<8x16xf32> -> vector<8x16xf32>
    %30 = vector.extract_strided_slice %8 {offsets = [0, 16], sizes = [8, 16], strides = [1, 1]} : vector<8x64xf32> to vector<8x16xf32>
    %31 = vector.extract_strided_slice %13 {offsets = [0, 16], sizes = [16, 16], strides = [1, 1]} : vector<16x64xf32> to vector<16x16xf32>
    %32 = vector.extract_strided_slice %14 {offsets = [0, 16], sizes = [16, 16], strides = [1, 1]} : vector<16x64xf32> to vector<16x16xf32>
    %cst_16 = arith.constant dense<0.000000e+00> : vector<8x16xf32>
    %33 = tpu.matmul %30, %31, %cst_16 {dimension_numbers = #tpu.dot_dimension_numbers<[1], [1], [0], [0], [0, 0, 1, 0], [], []>} : vector<8x16xf32>, vector<16x16xf32>, vector<8x16xf32> -> vector<8x16xf32>
    %cst_17 = arith.constant dense<0xFF800000> : vector<8xf32>
    %34 = vector.multi_reduction <maximumf>, %33, %cst_17 [1] : vector<8x16xf32> to vector<8xf32>
    %35 = vector.shape_cast %34 : vector<8xf32> to vector<8x1xf32>
    %36 = vector.broadcast %35 : vector<8x1xf32> to vector<8x16xf32>
    %37 = arith.subf %33, %36 : vector<8x16xf32>
    %38 = math.exp %37 : vector<8x16xf32>
    %cst_18 = arith.constant dense<0.000000e+00> : vector<8xf32>
    %39 = vector.multi_reduction <add>, %38, %cst_18 [1] : vector<8x16xf32> to vector<8xf32>
    %40 = vector.shape_cast %39 : vector<8xf32> to vector<8x1xf32>
    %41 = tpu.reciprocal %40 {approx = true} : vector<8x1xf32> -> vector<8x1xf32>
    %42 = vector.broadcast %41 : vector<8x1xf32> to vector<8x16xf32>
    %43 = arith.mulf %38, %42 : vector<8x16xf32>
    %cst_19 = arith.constant dense<0.000000e+00> : vector<8x16xf32>
    %44 = tpu.matmul %43, %32, %cst_19 {dimension_numbers = #tpu.dot_dimension_numbers<[1], [0], [0], [1], [0, 0, 1, 1], [], []>} : vector<8x16xf32>, vector<16x16xf32>, vector<8x16xf32> -> vector<8x16xf32>
    %45 = vector.extract_strided_slice %8 {offsets = [0, 32], sizes = [8, 16], strides = [1, 1]} : vector<8x64xf32> to vector<8x16xf32>
    %46 = vector.extract_strided_slice %13 {offsets = [0, 32], sizes = [16, 16], strides = [1, 1]} : vector<16x64xf32> to vector<16x16xf32>
    %47 = vector.extract_strided_slice %14 {offsets = [0, 32], sizes = [16, 16], strides = [1, 1]} : vector<16x64xf32> to vector<16x16xf32>
    %cst_20 = arith.constant dense<0.000000e+00> : vector<8x16xf32>
    %48 = tpu.matmul %45, %46, %cst_20 {dimension_numbers = #tpu.dot_dimension_numbers<[1], [1], [0], [0], [0, 0, 1, 0], [], []>} : vector<8x16xf32>, vector<16x16xf32>, vector<8x16xf32> -> vector<8x16xf32>
    %cst_21 = arith.constant dense<0xFF800000> : vector<8xf32>
    %49 = vector.multi_reduction <maximumf>, %48, %cst_21 [1] : vector<8x16xf32> to vector<8xf32>
    %50 = vector.shape_cast %49 : vector<8xf32> to vector<8x1xf32>
    %51 = vector.broadcast %50 : vector<8x1xf32> to vector<8x16xf32>
    %52 = arith.subf %48, %51 : vector<8x16xf32>
    %53 = math.exp %52 : vector<8x16xf32>
    %cst_22 = arith.constant dense<0.000000e+00> : vector<8xf32>
    %54 = vector.multi_reduction <add>, %53, %cst_22 [1] : vector<8x16xf32> to vector<8xf32>
    %55 = vector.shape_cast %54 : vector<8xf32> to vector<8x1xf32>
    %56 = tpu.reciprocal %55 {approx = true} : vector<8x1xf32> -> vector<8x1xf32>
    %57 = vector.broadcast %56 : vector<8x1xf32> to vector<8x16xf32>
    %58 = arith.mulf %53, %57 : vector<8x16xf32>
    %cst_23 = arith.constant dense<0.000000e+00> : vector<8x16xf32>
    %59 = tpu.matmul %58, %47, %cst_23 {dimension_numbers = #tpu.dot_dimension_numbers<[1], [0], [0], [1], [0, 0, 1, 1], [], []>} : vector<8x16xf32>, vector<16x16xf32>, vector<8x16xf32> -> vector<8x16xf32>
    %60 = vector.extract_strided_slice %8 {offsets = [0, 48], sizes = [8, 16], strides = [1, 1]} : vector<8x64xf32> to vector<8x16xf32>
    %61 = vector.extract_strided_slice %13 {offsets = [0, 48], sizes = [16, 16], strides = [1, 1]} : vector<16x64xf32> to vector<16x16xf32>
    %62 = vector.extract_strided_slice %14 {offsets = [0, 48], sizes = [16, 16], strides = [1, 1]} : vector<16x64xf32> to vector<16x16xf32>
    %cst_24 = arith.constant dense<0.000000e+00> : vector<8x16xf32>
    %63 = tpu.matmul %60, %61, %cst_24 {dimension_numbers = #tpu.dot_dimension_numbers<[1], [1], [0], [0], [0, 0, 1, 0], [], []>} : vector<8x16xf32>, vector<16x16xf32>, vector<8x16xf32> -> vector<8x16xf32>
    %cst_25 = arith.constant dense<0xFF800000> : vector<8xf32>
    %64 = vector.multi_reduction <maximumf>, %63, %cst_25 [1] : vector<8x16xf32> to vector<8xf32>
    %65 = vector.shape_cast %64 : vector<8xf32> to vector<8x1xf32>
    %66 = vector.broadcast %65 : vector<8x1xf32> to vector<8x16xf32>
    %67 = arith.subf %63, %66 : vector<8x16xf32>
    %68 = math.exp %67 : vector<8x16xf32>
    %cst_26 = arith.constant dense<0.000000e+00> : vector<8xf32>
    %69 = vector.multi_reduction <add>, %68, %cst_26 [1] : vector<8x16xf32> to vector<8xf32>
    %70 = vector.shape_cast %69 : vector<8xf32> to vector<8x1xf32>
    %71 = tpu.reciprocal %70 {approx = true} : vector<8x1xf32> -> vector<8x1xf32>
    %72 = vector.broadcast %71 : vector<8x1xf32> to vector<8x16xf32>
    %73 = arith.mulf %68, %72 : vector<8x16xf32>
    %cst_27 = arith.constant dense<0.000000e+00> : vector<8x16xf32>
    %74 = tpu.matmul %73, %62, %cst_27 {dimension_numbers = #tpu.dot_dimension_numbers<[1], [0], [0], [1], [0, 0, 1, 1], [], []>} : vector<8x16xf32>, vector<16x16xf32>, vector<8x16xf32> -> vector<8x16xf32>
    %75 = tpu.concatenate %29, %44, %59, %74 in 1 : vector<8x16xf32>, vector<8x16xf32>, vector<8x16xf32>, vector<8x16xf32> -> vector<8x64xf32>
    %c0_28 = arith.constant 0 : index
    %c0_29 = arith.constant 0 : index
    %76 = vector.load %arg5[%c0_28, %c0_29] : memref<64x128xf32, #tpu.memory_space<vmem>>, vector<64x128xf32>
    %cst_30 = arith.constant dense<0.000000e+00> : vector<8x128xf32>
    %77 = tpu.matmul %75, %76, %cst_30 {dimension_numbers = #tpu.dot_dimension_numbers<[1], [0], [0], [1], [0, 0, 1, 1], [], []>} : vector<8x64xf32>, vector<64x128xf32>, vector<8x128xf32> -> vector<8x128xf32>
    %78 = vector.broadcast %4 : vector<1x128xf32> to vector<8x128xf32>
    %79 = arith.addf %77, %78 : vector<8x128xf32>
    %c0_31 = arith.constant 0 : index
    %c0_32 = arith.constant 0 : index
    %80 = vector.load %arg7[%c0_31, %c0_32] : memref<8x128xf32, #tpu.memory_space<vmem>>, vector<8x128xf32>
    tpu.vector_store %arg7[%c0_31, %c0_32], %79 {strides = array<i32>} : memref<8x128xf32, #tpu.memory_space<vmem>>, vector<8x128xf32>,
    return
  }
  func.func @transform_0(%arg0: i32) -> (i32, i32) {
    %c0_i32 = arith.constant 0 : i32
    %c0_i32_0 = arith.constant 0 : i32
    return %arg0, %c0_i32 : i32, i32
  }
  func.func @transform_1(%arg0: i32) -> (i32, i32) {
    %c0_i32 = arith.constant 0 : i32
    %c0_i32_0 = arith.constant 0 : i32
    return %arg0, %c0_i32 : i32, i32
  }
  func.func @transform_2(%arg0: i32) -> (i32, i32) {
    %c0_i32 = arith.constant 0 : i32
    %c0_i32_0 = arith.constant 0 : i32
    %c0_i32_1 = arith.constant 0 : i32
    return %c0_i32, %c0_i32_0 : i32, i32
  }
  func.func @transform_3(%arg0: i32) -> (i32, i32) {
    %c0_i32 = arith.constant 0 : i32
    %c0_i32_0 = arith.constant 0 : i32
    %c0_i32_1 = arith.constant 0 : i32
    return %c0_i32, %c0_i32_0 : i32, i32
  }
  func.func @transform_4(%arg0: i32) -> (i32, i32) {
    %c0_i32 = arith.constant 0 : i32
    %c0_i32_0 = arith.constant 0 : i32
    %c0_i32_1 = arith.constant 0 : i32
    return %c0_i32, %c0_i32_0 : i32, i32
  }
  func.func @transform_5(%arg0: i32) -> (i32, i32) {
    %c0_i32 = arith.constant 0 : i32
    %c0_i32_0 = arith.constant 0 : i32
    %c0_i32_1 = arith.constant 0 : i32
    return %c0_i32, %c0_i32_0 : i32, i32
  }
  func.func @transform_6(%arg0: i32) -> (i32, i32) {
    %c0_i32 = arith.constant 0 : i32
    %c0_i32_0 = arith.constant 0 : i32
    return %arg0, %c0_i32 : i32, i32
  }
}

</mosaic_0001>

<llo_original>
// kernel: cross_mha.1
$region0: #{cross_mha.1}
  #allocation0 [shape = 'u32[]', space=smem, size = 0x4, offset = 0x4, fixed_abs, tag = 'smem constant byte address 0x4 - core index']
  #allocation1 [shape = 'u32[72,128]{1,0:T(1,128)}', space=vmem, size = 0x9000, scoped, tag = 'internal scratch']
  %s0 = inlined_call_operand.hbm [shape: f32[16,24], index: 0, kind: input, shape index: {}]
  %s1 = inlined_call_operand.hbm [shape: f32[32,32], index: 1, kind: input, shape index: {}]
  %s2 = inlined_call_operand.hbm [shape: f32[24,64], index: 2, kind: input, shape index: {}]
  %s3 = inlined_call_operand.hbm [shape: f32[32,256], index: 3, kind: input, shape index: {}]
  %s4 = inlined_call_operand.hbm [shape: f32[64,128], index: 4, kind: input, shape index: {}]
  %s5 = inlined_call_operand.vmem [shape: f32[1,512], index: 5, kind: input, shape index: {}]
  %s6 = inlined_call_operand.hbm [shape: f32[16,128], index: 6, kind: output, shape index: {}]
  %s7 = sld [smem:[#allocation0]]
  $region77: #{cross_mha.1} parent=0
    _
  %s9 = ssub.s32 1, %s7
  %s10 = scalar_select 0, %s9, %s7
  $region1: #{cross_mha.1} parent=0
    #allocation2 [shape = 'u8[8192]{0}', space=vmem, size = 0x2000, scoped, tag = 'input window, operand 0']
    #allocation3 [shape = 's32[2]{0}', space=sflag, size = 0x8, scoped, tag = 'scoped memory for cross_mha.1']
    #allocation4 [shape = 's32[2]{0}', space=sflag, size = 0x8, scoped, tag = 'scoped memory for cross_mha.1']
    #allocation5 [shape = 'u8[16384]{0}', space=vmem, size = 0x4000, scoped, tag = 'input window, operand 1']
    #allocation6 [shape = 's32[2]{0}', space=sflag, size = 0x8, scoped, tag = 'scoped memory for cross_mha.1']
    #allocation7 [shape = 'u8[12288]{0}', space=vmem, size = 0x3000, scoped, tag = 'input window, operand 2, single buffered']
    #allocation8 [shape = 'u8[32768]{0}', space=vmem, size = 0x8000, scoped, tag = 'input window, operand 3, single buffered']
    #allocation9 [shape = 's32[1]{0}', space=sflag, size = 0x4, scoped, tag = 'scoped memory for cross_mha.1']
    #allocation10 [shape = 'u8[32768]{0}', space=vmem, size = 0x8000, scoped, tag = 'input window, operand 4, single buffered']
    #allocation11 [shape = 'u8[8192]{0}', space=vmem, size = 0x2000, scoped, tag = 'output window, operand 0']
    %11 = vsyncpa [#allocation3], 0
    %s12 = scalar_lea.sflag [#allocation3], 1
    %13 = vsyncpa %s12, 0
    %14 = vsyncpa [#allocation6], 0
    %s15 = scalar_lea.sflag [#allocation6], 1
    %16 = vsyncpa %s15, 0
    %17 = vsyncpa [#allocation9], 0
    %18 = vsyncpa [#allocation4], 0
    %s19 = scalar_lea.sflag [#allocation4], 1
    %20 = vsyncpa %s19, 0
    loop: start=0, step=1, limit=4
    $region2: #{cross_mha.1} parent=1 // loop_pre_header
      _
    $region3: #{cross_mha.1} parent=1 // loop_header
      %s22 = sphi 0, %s26
      %p23 = scmp.ge.s32.totalorder %s22, 4
      %s32 = sphi 0, %s34
      %s35 = sphi 0, %s32
      %s36 = sphi 0, %s35
      %s52 = sphi 0, %s36
      %s58 = sphi 0, %s60
      %s61 = sphi 0, %s58
      %s62 = sphi 0, %s61
      %s78 = sphi 0, %s62
      %s82 = sphi 0, %s82
      %s84 = sphi 0, %s82
      %s85 = sphi 0, %s84
      %s99 = sphi 0, %s85
      %s103 = sphi 0, %s103
      %s105 = sphi 0, %s103
      %s106 = sphi 0, %s105
      %s120 = sphi 0, %s106
      %s124 = sphi 0, %s124
      %s126 = sphi 0, %s124
      %s127 = sphi 0, %s126
      %s141 = sphi 0, %s127
      %s145 = sphi 0, %s145
      %s147 = sphi 0, %s145
      %s148 = sphi 0, %s147
      %s162 = sphi 0, %s148
      %s168 = sphi 0, %s170
      %s171 = sphi 0, %s168
      %s172 = sphi 0, %s171
      %s188 = sphi 0, %s172
    $region4: #{cross_mha.1} parent=1 // loop_header_branch
      %25 = sbr.rel (%p23) target = $region8
    $region5: #{cross_mha.1} parent=1 // loop_body
      %s27 = ssub.s32 %s22, 1
      %s28 = ssub.s32 %s22, 2
      %s29 = sadd.s32 %s22, 1
      %s30 = ssub.s32 %s22, %s29
      %p31 = scmp.eq.s32.totalorder %s30, 0
      %s33 = sadd.s32 %s32, 1
      %s34 = scalar_select %p31, %s32, %s33
      %p37 = pneg %p31
      %p38 = scmp.eq.s32.totalorder %s22, 1
      %p39 = por %p37, %p38
      %p40 = scmp.ne.s32.totalorder %s32, %s35
      %p41 = scmp.eq.s32.totalorder %s22, 0
      %p42 = por %p40, %p41
      %p43 = scmp.ne.s32.totalorder %s32, %s35
      %p44 = scmp.eq.s32.totalorder %s27, 1
      %p45 = por %p43, %p44
      %p46 = scmp.ne.s32.totalorder %s35, %s36
      %p47 = scmp.eq.s32.totalorder %s27, 0
      %p48 = por %p46, %p47
      %p49 = scmp.ne.s32.totalorder %s35, %s36
      %p50 = scmp.eq.s32.totalorder %s28, 1
      %p51 = por %p49, %p50
      %p53 = scmp.ne.s32.totalorder %s36, %s52
      %p54 = scmp.eq.s32.totalorder %s28, 0
      %p55 = por %p53, %p54
      %s56 = ssub.s32 %s22, %s29
      %p57 = scmp.eq.s32.totalorder %s56, 0
      %s59 = sadd.s32 %s58, 1
      %s60 = scalar_select %p57, %s58, %s59
      %p63 = pneg %p57
      %p64 = scmp.eq.s32.totalorder %s22, 1
      %p65 = por %p63, %p64
      %p66 = scmp.ne.s32.totalorder %s58, %s61
      %p67 = scmp.eq.s32.totalorder %s22, 0
      %p68 = por %p66, %p67
      %p69 = scmp.ne.s32.totalorder %s58, %s61
      %p70 = scmp.eq.s32.totalorder %s27, 1
      %p71 = por %p69, %p70
      %p72 = scmp.ne.s32.totalorder %s61, %s62
      %p73 = scmp.eq.s32.totalorder %s27, 0
      %p74 = por %p72, %p73
      %p75 = scmp.ne.s32.totalorder %s61, %s62
      %p76 = scmp.eq.s32.totalorder %s28, 1
      %p77 = por %p75, %p76
      %p79 = scmp.ne.s32.totalorder %s62, %s78
      %p80 = scmp.eq.s32.totalorder %s28, 0
      %p81 = por %p79, %p80
      %s83 = sadd.s32 %s82, 1
      %p86 = scmp.eq.s32.totalorder %s22, 1
      %p87 = scmp.ne.s32.totalorder %s82, %s84
      %p88 = scmp.eq.s32.totalorder %s22, 0
      %p89 = por %p87, %p88
      %p90 = scmp.ne.s32.totalorder %s82, %s84
      %p91 = scmp.eq.s32.totalorder %s27, 1
      %p92 = por %p90, %p91
      %p93 = scmp.ne.s32.totalorder %s84, %s85
      %p94 = scmp.eq.s32.totalorder %s27, 0
      %p95 = por %p93, %p94
      %p96 = scmp.ne.s32.totalorder %s84, %s85
      %p97 = scmp.eq.s32.totalorder %s28, 1
      %p98 = por %p96, %p97
      %p100 = scmp.ne.s32.totalorder %s85, %s99
      %p101 = scmp.eq.s32.totalorder %s28, 0
      %p102 = por %p100, %p101
      %s104 = sadd.s32 %s103, 1
      %p107 = scmp.eq.s32.totalorder %s22, 1
      %p108 = scmp.ne.s32.totalorder %s103, %s105
      %p109 = scmp.eq.s32.totalorder %s22, 0
      %p110 = por %p108, %p109
      %p111 = scmp.ne.s32.totalorder %s103, %s105
      %p112 = scmp.eq.s32.totalorder %s27, 1
      %p113 = por %p111, %p112
      %p114 = scmp.ne.s32.totalorder %s105, %s106
      %p115 = scmp.eq.s32.totalorder %s27, 0
      %p116 = por %p114, %p115
      %p117 = scmp.ne.s32.totalorder %s105, %s106
      %p118 = scmp.eq.s32.totalorder %s28, 1
      %p119 = por %p117, %p118
      %p121 = scmp.ne.s32.totalorder %s106, %s120
      %p122 = scmp.eq.s32.totalorder %s28, 0
      %p123 = por %p121, %p122
      %s125 = sadd.s32 %s124, 1
      %p128 = scmp.eq.s32.totalorder %s22, 1
      %p129 = scmp.ne.s32.totalorder %s124, %s126
      %p130 = scmp.eq.s32.totalorder %s22, 0
      %p131 = por %p129, %p130
      %p132 = scmp.ne.s32.totalorder %s124, %s126
      %p133 = scmp.eq.s32.totalorder %s27, 1
      %p134 = por %p132, %p133
      %p135 = scmp.ne.s32.totalorder %s126, %s127
      %p136 = scmp.eq.s32.totalorder %s27, 0
      %p137 = por %p135, %p136
      %p138 = scmp.ne.s32.totalorder %s126, %s127
      %p139 = scmp.eq.s32.totalorder %s28, 1
      %p140 = por %p138, %p139
      %p142 = scmp.ne.s32.totalorder %s127, %s141
      %p143 = scmp.eq.s32.totalorder %s28, 0
      %p144 = por %p142, %p143
      %s146 = sadd.s32 %s145, 1
      %p149 = scmp.eq.s32.totalorder %s22, 1
      %p150 = scmp.ne.s32.totalorder %s145, %s147
      %p151 = scmp.eq.s32.totalorder %s22, 0
      %p152 = por %p150, %p151
      %p153 = scmp.ne.s32.totalorder %s145, %s147
      %p154 = scmp.eq.s32.totalorder %s27, 1
      %p155 = por %p153, %p154
      %p156 = scmp.ne.s32.totalorder %s147, %s148
      %p157 = scmp.eq.s32.totalorder %s27, 0
      %p158 = por %p156, %p157
      %p159 = scmp.ne.s32.totalorder %s147, %s148
      %p160 = scmp.eq.s32.totalorder %s28, 1
      %p161 = por %p159, %p160
      %p163 = scmp.ne.s32.totalorder %s148, %s162
      %p164 = scmp.eq.s32.totalorder %s28, 0
      %p165 = por %p163, %p164
      %s166 = ssub.s32 %s22, %s29
      %p167 = scmp.eq.s32.totalorder %s166, 0
      %s169 = sadd.s32 %s168, 1
      %s170 = scalar_select %p167, %s168, %s169
      %p173 = pneg %p167
      %p174 = scmp.eq.s32.totalorder %s22, 1
      %p175 = por %p173, %p174
      %p176 = scmp.ne.s32.totalorder %s168, %s171
      %p177 = scmp.eq.s32.totalorder %s22, 0
      %p178 = por %p176, %p177
      %p179 = scmp.ne.s32.totalorder %s168, %s171
      %p180 = scmp.eq.s32.totalorder %s27, 1
      %p181 = por %p179, %p180
      %p182 = scmp.ne.s32.totalorder %s171, %s172
      %p183 = scmp.eq.s32.totalorder %s27, 0
      %p184 = por %p182, %p183
      %p185 = scmp.ne.s32.totalorder %s171, %s172
      %p186 = scmp.eq.s32.totalorder %s28, 1
      %p187 = por %p185, %p186
      %p189 = scmp.ne.s32.totalorder %s172, %s188
      %p190 = scmp.eq.s32.totalorder %s28, 0
      %p191 = por %p189, %p190
      %p192 = scmp.le.s32.totalorder 1, %s22
      %p193 = scmp.lt.s32.totalorder %s22, 3
      %p194 = pnand %p192, %p193
      %p195 = pneg %p194
      // Predicated region
      $region9: #{cross_mha.1} parent=5 // pred_check
        _
      $region10: #{cross_mha.1} parent=5 // pred_check_branch
        %197 = sbr.rel (%p194) target = $region12
      $region11: #{cross_mha.1} parent=5 // pred_region
        %s198 = ssub.s32 %s22, 1
        // Predicated region
        $region13: #{cross_mha.1} parent=11 // pred_check
          %p199 = pneg %p95
        $region14: #{cross_mha.1} parent=11 // pred_check_branch
          %201 = sbr.rel (%p199) target = $region16
        $region15: #{cross_mha.1} parent=11 // pred_region
          %203 = vsyncadd [#allocation6], 0
          %s204 = sshll.u32 %s2, 4
          %s205 = int_to_ptr.hbm [resolvable:$true] %s204
          %s206 = sshll.u32 [#allocation7], 4
          %s207 = int_to_ptr.vmem [resolvable:$true] %s206
          %212 = dma.hbm_to_vmem [thread:$0]  %s205, 384, %s207, [#allocation6], 128, 128, 8
        $region16: #{cross_mha.1} parent=11 // pred_fallthru
          _
        // Predicated region
        $region17: #{cross_mha.1} parent=11 // pred_check
          %p213 = pneg %p116
        $region18: #{cross_mha.1} parent=11 // pred_check_branch
          %215 = sbr.rel (%p213) target = $region20
        $region19: #{cross_mha.1} parent=11 // pred_region
          %217 = vsyncadd [#allocation9], 0
          %s218 = sshll.u32 %s3, 4
          %s219 = int_to_ptr.hbm [resolvable:$true] %s218
          %s220 = sshll.u32 [#allocation8], 4
          %s221 = int_to_ptr.vmem [resolvable:$true] %s220
          %226 = dma.hbm_to_vmem [thread:$0]  %s219, 1024, %s221, [#allocation9], 256, 256, 16
        $region20: #{cross_mha.1} parent=11 // pred_fallthru
          _
        // Predicated region
        $region21: #{cross_mha.1} parent=11 // pred_check
          %p227 = pneg %p137
        $region22: #{cross_mha.1} parent=11 // pred_check_branch
          %229 = sbr.rel (%p227) target = $region24
        $region23: #{cross_mha.1} parent=11 // pred_region
          %231 = vsyncadd [#allocation9], 0
          %s232 = sshll.u32 %s4, 4
          %s233 = int_to_ptr.hbm [resolvable:$true] %s232
          %s234 = sshll.u32 [#allocation10], 4
          %s235 = int_to_ptr.vmem [resolvable:$true] %s234
          %240 = dma.hbm_to_vmem [thread:$0]  %s233, 1024, %s235, [#allocation9], 128, 128, 8
        $region24: #{cross_mha.1} parent=11 // pred_fallthru
          _
        // Predicated region
        $region25: #{cross_mha.1} parent=11 // pred_check
          %p241 = pneg %p158
        $region26: #{cross_mha.1} parent=11 // pred_check_branch
          %243 = sbr.rel (%p241) target = $region28
        $region27: #{cross_mha.1} parent=11 // pred_region
          _
        $region28: #{cross_mha.1} parent=11 // pred_fallthru
          _
      $region12: #{cross_mha.1} parent=5 // pred_fallthru
        _
      %p244 = scmp.lt.s32.totalorder %s22, 2
      // Predicated region
      $region29: #{cross_mha.1} parent=5 // pred_check
        %p245 = pneg %p244
      $region30: #{cross_mha.1} parent=5 // pred_check_branch
        %247 = sbr.rel (%p245) target = $region32
      $region31: #{cross_mha.1} parent=5 // pred_region
        // Predicated region
        $region33: #{cross_mha.1} parent=31 // pred_check
          %p248 = pneg %p42
        $region34: #{cross_mha.1} parent=31 // pred_check_branch
          %250 = sbr.rel (%p248) target = $region36
        $region35: #{cross_mha.1} parent=31 // pred_region
          %s251 = sand.u32 %s32, 1
          %s252 = scalar_lea.sflag [#allocation3], %s251
          %s253 = sand.u32 %s32, 1
          %s254 = smul.addr %s253, 8
          %s255 = scalar_lea.vmem [#allocation2], %s254
          %257 = vsyncadd %s252, 0
          %s258 = smul.addr %s22, 8
          %s259 = scalar_lea.hbm %s0, %s258
          %s261 = sshll.u32 %s259, 4
          %s262 = int_to_ptr.hbm [resolvable:$true] %s261
          %s263 = sshll.u32 %s255, 4
          %s264 = int_to_ptr.vmem [resolvable:$true] %s263
          %266 = dma.hbm_to_vmem [thread:$0]  %s262, 128, %s264, %s252
        $region36: #{cross_mha.1} parent=31 // pred_fallthru
          _
        // Predicated region
        $region37: #{cross_mha.1} parent=31 // pred_check
          %p267 = pneg %p68
        $region38: #{cross_mha.1} parent=31 // pred_check_branch
          %269 = sbr.rel (%p267) target = $region40
        $region39: #{cross_mha.1} parent=31 // pred_region
          %s270 = sand.u32 %s22, 1
          %s271 = scalar_lea.sflag [#allocation6], %s270
          %s272 = sand.u32 %s58, 1
          %s273 = smul.addr %s272, 16
          %s274 = scalar_lea.vmem [#allocation5], %s273
          %s275 = smul.u32 2, %s22
          %277 = vsyncadd %s271, 0
          %s278 = smul.addr %s275, 8
          %s279 = scalar_lea.hbm %s1, %s278
          %s280 = sshll.u32 %s279, 4
          %s281 = int_to_ptr.hbm [resolvable:$true] %s280
          %s282 = sshll.u32 %s274, 4
          %s283 = int_to_ptr.vmem [resolvable:$true] %s282
          %288 = dma.hbm_to_vmem [thread:$0]  %s281, 256, %s283, %s271, 128, 128, 8
        $region40: #{cross_mha.1} parent=31 // pred_fallthru
          _
      $region32: #{cross_mha.1} parent=5 // pred_fallthru
        _
      %p289 = scmp.le.s32.totalorder 1, %s22
      %p290 = scmp.lt.s32.totalorder %s22, 3
      %p291 = pnand %p289, %p290
      %p292 = pneg %p291
      // Predicated region
      $region41: #{cross_mha.1} parent=5 // pred_check
        _
      $region42: #{cross_mha.1} parent=5 // pred_check_branch
        %294 = sbr.rel (%p291) target = $region44
      $region43: #{cross_mha.1} parent=5 // pred_region
        %s295 = ssub.s32 %s22, 1
        %s296 = sand.u32 %s35, 1
        %s297 = scalar_lea.sflag [#allocation3], %s296
        %s298 = sand.u32 %s35, 1
        %s299 = smul.addr %s298, 8
        %s300 = scalar_lea.vmem [#allocation2], %s299
        // Predicated region
        $region45: #{cross_mha.1} parent=43 // pred_check
          %p301 = pneg %p48
        $region46: #{cross_mha.1} parent=43 // pred_check_branch
          %303 = sbr.rel (%p301) target = $region48
        $region47: #{cross_mha.1} parent=43 // pred_region
          %305 = dma.done %s297, 128
        $region48: #{cross_mha.1} parent=43 // pred_fallthru
          _
        %s306 = sand.u32 %s27, 1
        %s307 = scalar_lea.sflag [#allocation6], %s306
        %s308 = sand.u32 %s61, 1
        %s309 = smul.addr %s308, 16
        %s310 = scalar_lea.vmem [#allocation5], %s309
        // Predicated region
        $region49: #{cross_mha.1} parent=43 // pred_check
          %p311 = pneg %p74
        $region50: #{cross_mha.1} parent=43 // pred_check_branch
          %313 = sbr.rel (%p311) target = $region52
        $region51: #{cross_mha.1} parent=43 // pred_region
          %315 = dma.done %s307, 256
        $region52: #{cross_mha.1} parent=43 // pred_fallthru
          _
        // Predicated region
        $region53: #{cross_mha.1} parent=43 // pred_check
          %p316 = pneg %p95
        $region54: #{cross_mha.1} parent=43 // pred_check_branch
          %318 = sbr.rel (%p316) target = $region56
        $region55: #{cross_mha.1} parent=43 // pred_region
          %320 = dma.done [#allocation6], 384
        $region56: #{cross_mha.1} parent=43 // pred_fallthru
          _
        // Predicated region
        $region57: #{cross_mha.1} parent=43 // pred_check
          %p321 = pneg %p116
        $region58: #{cross_mha.1} parent=43 // pred_check_branch
          %323 = sbr.rel (%p321) target = $region60
        $region59: #{cross_mha.1} parent=43 // pred_region
          %325 = dma.done [#allocation9], 1024
        $region60: #{cross_mha.1} parent=43 // pred_fallthru
          _
        // Predicated region
        $region61: #{cross_mha.1} parent=43 // pred_check
          %p326 = pneg %p137
        $region62: #{cross_mha.1} parent=43 // pred_check_branch
          %328 = sbr.rel (%p326) target = $region64
        $region63: #{cross_mha.1} parent=43 // pred_region
          %330 = dma.done [#allocation9], 1024
        $region64: #{cross_mha.1} parent=43 // pred_fallthru
          _
        %s331 = sand.u32 %s35, 1
        %s332 = scalar_lea.sflag [#allocation3], %s331
        %s333 = sand.u32 %s35, 1
        %s334 = smul.addr %s333, 8
        %s335 = scalar_lea.vmem [#allocation2], %s334
        %p336 = pneg %p48
        %p337 = pneg %p45
        %s338 = sand.u32 %s27, 1
        %s339 = scalar_lea.sflag [#allocation6], %s338
        %s340 = sand.u32 %s61, 1
        %s341 = smul.addr %s340, 16
        %s342 = scalar_lea.vmem [#allocation5], %s341
        %p343 = pneg %p74
        %p344 = pneg %p71
        %p345 = pneg %p95
        %p346 = pneg %p92
        %p347 = pneg %p116
        %p348 = pneg %p113
        %p349 = pneg %p137
        %p350 = pneg %p134
        %p351 = pneg %p158
        %p352 = pneg %p155
        %p353 = pneg %p184
        %p354 = pneg %p181
        %s355 = sand.u32 %s171, 1
        %s356 = scalar_lea.sflag [#allocation4], %s355
        %s357 = sand.u32 %s171, 1
        %s358 = smul.addr %s357, 8
        %s359 = scalar_lea.vmem [#allocation11], %s358
        %s360 = smul.u32 2, %s27
        %v361 = vld [vmem:[%s300] sm:$0xff]
        %v362 = vld [vmem:[%s310] sm:$0xff]
        %v363 = vld [vmem:[%s310 + $0x8] sm:$0xff]
        %v364 = vld [vmem:[%s5] sm:$0x1]
        %v365 = vld [vmem:[%s5 + $0x1] sm:$0x3]
        %v366 = vld [vmem:[%s5 + $0x3] sm:$0x1]
        %v367 = vld [vmem:[#allocation7] sm:$0xff]
        %v368 = vld [vmem:[#allocation7 + $0x8] sm:$0xff]
        %v369 = vld [vmem:[#allocation7 + $0x10] sm:$0xff]
        %v371 = vperm.slane %v364, 0
        %vm373 = vcmask 195584
        %v375 = vsel %vm373, %v361, 0
        %377 = vmatpush.msra.mxu0 0.0
        %378 = vmatpush.msra.mxu0 0.0
        %379 = vmatpush.msra.mxu0 0.0
        %380 = vmatpush.msra.mxu0 0.0
        %381 = vmatpush.msra.mxu0 0.0
        %382 = vmatpush.msra.mxu0 0.0
        %383 = vmatpush.msra.mxu0 0.0
        %384 = vmatpush.msra.mxu0 0.0
        %385 = vmatpush.msra.mxu0 0.0
        %386 = vmatpush.msra.mxu0 0.0
        %387 = vmatpush.msra.mxu0 0.0
        %388 = vmatpush.msra.mxu0 0.0
        %389 = vmatpush.msra.mxu0 0.0
        %390 = vmatpush.msra.mxu0 %v369
        %391 = vmatpush.msra.mxu0 %v368
        %392 = vmatpush.msra.mxu0 %v367
        %393 = vmatmul.f32.gmra.mxu0 %v375
        %v394 = vpop.f32.mrf.mxu0
        %v395 = vadd.f32 %v371, %v394
        %396 = vdwg.mxu0
        %v397 = vld [vmem:[#allocation8] sm:$0xff]
        %v398 = vld [vmem:[#allocation8 + $0x8] sm:$0xff]
        %v399 = vld [vmem:[#allocation8 + $0x10] sm:$0xff]
        %v400 = vld [vmem:[#allocation8 + $0x18] sm:$0xff]
        %v401 = vld [vmem:[#allocation8 + $0x20] sm:$0xff]
        %v402 = vld [vmem:[#allocation8 + $0x28] sm:$0xff]
        %v403 = vld [vmem:[#allocation8 + $0x30] sm:$0xff]
        %v404 = vld [vmem:[#allocation8 + $0x38] sm:$0xff]
        %v406 = vperm.slane %v365, 0
        %v407 = vperm.slane %v365, 1
        %vm410 = vcmask 261120
        %v412 = vsel %vm410, %v362, 0
        %v415 = vsel %vm410, %v363, 0
        %417 = vmatpush.msra.mxu0 0.0
        %418 = vmatpush.msra.mxu0 0.0
        %419 = vmatpush.msra.mxu0 0.0
        %420 = vmatpush.msra.mxu0 0.0
        %421 = vmatpush.msra.mxu0 0.0
        %422 = vmatpush.msra.mxu0 0.0
        %423 = vmatpush.msra.mxu0 0.0
        %424 = vmatpush.msra.mxu0 0.0
        %425 = vmatpush.msra.mxu0 0.0
        %426 = vmatpush.msra.mxu0 0.0
        %427 = vmatpush.msra.mxu0 0.0
        %428 = vmatpush.msra.mxu0 0.0
        %429 = vmatpush.msra.mxu0 %v403
        %430 = vmatpush.msra.mxu0 %v401
        %431 = vmatpush.msra.mxu0 %v399
        %432 = vmatpush.msra.mxu0 %v397
        %433 = vmatmul.f32.gmra.mxu0 %v412
        %v434 = vpop.f32.mrf.mxu0
        %v435 = vadd.f32 %v406, %v434
        %436 = vmatmul.f32.gmra.mxu0 %v415
        %v437 = vpop.f32.mrf.mxu0
        %v438 = vadd.f32 %v406, %v437
        %439 = vdwg.mxu0
        %440 = vmatpush.msra.mxu0 0.0
        %441 = vmatpush.msra.mxu0 0.0
        %442 = vmatpush.msra.mxu0 0.0
        %443 = vmatpush.msra.mxu0 0.0
        %444 = vmatpush.msra.mxu0 0.0
        %445 = vmatpush.msra.mxu0 0.0
        %446 = vmatpush.msra.mxu0 0.0
        %447 = vmatpush.msra.mxu0 0.0
        %448 = vmatpush.msra.mxu0 0.0
        %449 = vmatpush.msra.mxu0 0.0
        %450 = vmatpush.msra.mxu0 0.0
        %451 = vmatpush.msra.mxu0 0.0
        %452 = vmatpush.msra.mxu0 %v404
        %453 = vmatpush.msra.mxu0 %v402
        %454 = vmatpush.msra.mxu0 %v400
        %455 = vmatpush.msra.mxu0 %v398
        %456 = vmatmul.f32.gmra.mxu0 %v412
        %v457 = vpop.f32.mrf.mxu0
        %v458 = vadd.f32 %v407, %v457
        %459 = vmatmul.f32.gmra.mxu0 %v415
        %v460 = vpop.f32.mrf.mxu0
        %v461 = vadd.f32 %v407, %v460
        %462 = vdwg.mxu0
        %vm463 = vcmask 130048
        %v465 = vsel %vm463, %v395, 0
        %v468 = vsel %vm463, %v435, 0
        %v471 = vsel %vm463, %v438, 0
        %473 = vmatpush.xpose.msra.mxu0 0.0
        %474 = vmatpush.xpose.msra.mxu0 0.0
        %475 = vmatpush.xpose.msra.mxu0 0.0
        %476 = vmatpush.xpose.msra.mxu0 0.0
        %477 = vmatpush.xpose.msra.mxu0 0.0
        %478 = vmatpush.xpose.msra.mxu0 0.0
        %479 = vmatpush.xpose.msra.mxu0 0.0
        %480 = vmatpush.xpose.msra.mxu0 0.0
        %481 = vmatpush.xpose.msra.mxu0 0.0
        %482 = vmatpush.xpose.msra.mxu0 0.0
        %483 = vmatpush.xpose.msra.mxu0 0.0
        %484 = vmatpush.xpose.msra.mxu0 0.0
        %485 = vmatpush.xpose.msra.mxu0 0.0
        %486 = vmatpush.xpose.msra.mxu0 0.0
        %487 = vmatpush.xpose.msra.mxu0 %v471
        %488 = vmatpush.xpose.msra.mxu0 %v468
        %489 = vmatmul.f32.gmra.mxu0 %v465
        %v490 = vpop.f32.mrf.mxu0
        %v491 = vadd.f32 0.0, %v490
        %492 = vdwg.mxu0
        %v493 = vsel %vm463, %v491, -inf
        %494 = vmax.xlane.f32.xlu0 %v493
        %v495 = vpop.xlane.xlu0 %494
        %v496 = vsub.f32 %v491, %v495
        %v497 = vmul.f32 %v496, 1.442695
        %v498 = vpow.pop %v497
        %v499 = vsel %vm463, %v498, 0.0
        %500 = vadd.xlane.f32.xlu0 %v499
        %v501 = vpop.xlane.xlu0 %500
        %v502 = vrcp.pop %v501
        %v503 = vmul.f32 %v498, %v502
        %v505 = vsel %vm463, %v503, 0
        %507 = vmatpush.msra.mxu0 0.0
        %508 = vmatpush.msra.mxu0 0.0
        %509 = vmatpush.msra.mxu0 0.0
        %510 = vmatpush.msra.mxu0 0.0
        %511 = vmatpush.msra.mxu0 0.0
        %512 = vmatpush.msra.mxu0 0.0
        %513 = vmatpush.msra.mxu0 0.0
        %514 = vmatpush.msra.mxu0 0.0
        %515 = vmatpush.msra.mxu0 0.0
        %516 = vmatpush.msra.mxu0 0.0
        %517 = vmatpush.msra.mxu0 0.0
        %518 = vmatpush.msra.mxu0 0.0
        %519 = vmatpush.msra.mxu0 0.0
        %520 = vmatpush.msra.mxu0 0.0
        %521 = vmatpush.msra.mxu0 %v461
        %522 = vmatpush.msra.mxu0 %v458
        %523 = vmatmul.f32.gmra.mxu0 %v505
        %v524 = vpop.f32.mrf.mxu0
        %v525 = vadd.f32 0.0, %v524
        %526 = vdwg.mxu0
        %527 = vrot.lane.b32.xlu0 %v395, 112
        %v528 = vpop.permute.xlu0 %527
        %529 = vrot.lane.b32.xlu0 %v435, 112
        %v530 = vpop.permute.xlu0 %529
        %531 = vrot.lane.b32.xlu0 %v438, 112
        %v532 = vpop.permute.xlu0 %531
        %v533 = vsel %vm463, %v528, 0
        %v535 = vsel %vm463, %v530, 0
        %v537 = vsel %vm463, %v532, 0
        %539 = vmatpush.xpose.msra.mxu0 0.0
        %540 = vmatpush.xpose.msra.mxu0 0.0
        %541 = vmatpush.xpose.msra.mxu0 0.0
        %542 = vmatpush.xpose.msra.mxu0 0.0
        %543 = vmatpush.xpose.msra.mxu0 0.0
        %544 = vmatpush.xpose.msra.mxu0 0.0
        %545 = vmatpush.xpose.msra.mxu0 0.0
        %546 = vmatpush.xpose.msra.mxu0 0.0
        %547 = vmatpush.xpose.msra.mxu0 0.0
        %548 = vmatpush.xpose.msra.mxu0 0.0
        %549 = vmatpush.xpose.msra.mxu0 0.0
        %550 = vmatpush.xpose.msra.mxu0 0.0
        %551 = vmatpush.xpose.msra.mxu0 0.0
        %552 = vmatpush.xpose.msra.mxu0 0.0
        %553 = vmatpush.xpose.msra.mxu0 %v537
        %554 = vmatpush.xpose.msra.mxu0 %v535
        %555 = vmatmul.f32.gmra.mxu0 %v533
        %v556 = vpop.f32.mrf.mxu0
        %v557 = vadd.f32 0.0, %v556
        %558 = vdwg.mxu0
        %v559 = vsel %vm463, %v557, -inf
        %560 = vmax.xlane.f32.xlu0 %v559
        %v561 = vpop.xlane.xlu0 %560
        %v562 = vsub.f32 %v557, %v561
        %v563 = vmul.f32 %v562, 1.442695
        %v564 = vpow.pop %v563
        %v565 = vsel %vm463, %v564, 0.0
        %566 = vadd.xlane.f32.xlu0 %v565
        %v567 = vpop.xlane.xlu0 %566
        %v568 = vrcp.pop %v567
        %v569 = vmul.f32 %v564, %v568
        %572 = vrot.lane.b32.xlu0 %v458, 112
        %v573 = vpop.permute.xlu0 %572
        %574 = vrot.lane.b32.xlu0 %v461, 112
        %v575 = vpop.permute.xlu0 %574
        %v579 = vsel %vm463, %v569, 0
        %581 = vmatpush.msra.mxu0 0.0
        %582 = vmatpush.msra.mxu0 0.0
        %583 = vmatpush.msra.mxu0 0.0
        %584 = vmatpush.msra.mxu0 0.0
        %585 = vmatpush.msra.mxu0 0.0
        %586 = vmatpush.msra.mxu0 0.0
        %587 = vmatpush.msra.mxu0 0.0
        %588 = vmatpush.msra.mxu0 0.0
        %589 = vmatpush.msra.mxu0 0.0
        %590 = vmatpush.msra.mxu0 0.0
        %591 = vmatpush.msra.mxu0 0.0
        %592 = vmatpush.msra.mxu0 0.0
        %593 = vmatpush.msra.mxu0 0.0
        %594 = vmatpush.msra.mxu0 0.0
        %595 = vmatpush.msra.mxu0 %v575
        %596 = vmatpush.msra.mxu0 %v573
        %597 = vmatmul.f32.gmra.mxu0 %v579
        %v598 = vpop.f32.mrf.mxu0
        %v599 = vadd.f32 0.0, %v598
        %600 = vdwg.mxu0
        %601 = vrot.lane.b32.xlu0 %v395, 96
        %v602 = vpop.permute.xlu0 %601
        %603 = vrot.lane.b32.xlu0 %v435, 96
        %v604 = vpop.permute.xlu0 %603
        %605 = vrot.lane.b32.xlu0 %v438, 96
        %v606 = vpop.permute.xlu0 %605
        %v607 = vsel %vm463, %v602, 0
        %v609 = vsel %vm463, %v604, 0
        %v611 = vsel %vm463, %v606, 0
        %613 = vmatpush.xpose.msra.mxu0 0.0
        %614 = vmatpush.xpose.msra.mxu0 0.0
        %615 = vmatpush.xpose.msra.mxu0 0.0
        %616 = vmatpush.xpose.msra.mxu0 0.0
        %617 = vmatpush.xpose.msra.mxu0 0.0
        %618 = vmatpush.xpose.msra.mxu0 0.0
        %619 = vmatpush.xpose.msra.mxu0 0.0
        %620 = vmatpush.xpose.msra.mxu0 0.0
        %621 = vmatpush.xpose.msra.mxu0 0.0
        %622 = vmatpush.xpose.msra.mxu0 0.0
        %623 = vmatpush.xpose.msra.mxu0 0.0
        %624 = vmatpush.xpose.msra.mxu0 0.0
        %625 = vmatpush.xpose.msra.mxu0 0.0
        %626 = vmatpush.xpose.msra.mxu0 0.0
        %627 = vmatpush.xpose.msra.mxu0 %v611
        %628 = vmatpush.xpose.msra.mxu0 %v609
        %629 = vmatmul.f32.gmra.mxu0 %v607
        %v630 = vpop.f32.mrf.mxu0
        %v631 = vadd.f32 0.0, %v630
        %632 = vdwg.mxu0
        %v633 = vsel %vm463, %v631, -inf
        %634 = vmax.xlane.f32.xlu0 %v633
        %v635 = vpop.xlane.xlu0 %634
        %v636 = vsub.f32 %v631, %v635
        %v637 = vmul.f32 %v636, 1.442695
        %v638 = vpow.pop %v637
        %v639 = vsel %vm463, %v638, 0.0
        %640 = vadd.xlane.f32.xlu0 %v639
        %v641 = vpop.xlane.xlu0 %640
        %v642 = vrcp.pop %v641
        %v643 = vmul.f32 %v638, %v642
        %644 = vrot.lane.b32.xlu0 %v458, 96
        %v645 = vpop.permute.xlu0 %644
        %646 = vrot.lane.b32.xlu0 %v461, 96
        %v647 = vpop.permute.xlu0 %646
        %v651 = vsel %vm463, %v643, 0
        %653 = vmatpush.msra.mxu0 0.0
        %654 = vmatpush.msra.mxu0 0.0
        %655 = vmatpush.msra.mxu0 0.0
        %656 = vmatpush.msra.mxu0 0.0
        %657 = vmatpush.msra.mxu0 0.0
        %658 = vmatpush.msra.mxu0 0.0
        %659 = vmatpush.msra.mxu0 0.0
        %660 = vmatpush.msra.mxu0 0.0
        %661 = vmatpush.msra.mxu0 0.0
        %662 = vmatpush.msra.mxu0 0.0
        %663 = vmatpush.msra.mxu0 0.0
        %664 = vmatpush.msra.mxu0 0.0
        %665 = vmatpush.msra.mxu0 0.0
        %666 = vmatpush.msra.mxu0 0.0
        %667 = vmatpush.msra.mxu0 %v647
        %668 = vmatpush.msra.mxu0 %v645
        %669 = vmatmul.f32.gmra.mxu0 %v651
        %v670 = vpop.f32.mrf.mxu0
        %v671 = vadd.f32 0.0, %v670
        %672 = vdwg.mxu0
        %673 = vrot.lane.b32.xlu0 %v395, 80
        %v674 = vpop.permute.xlu0 %673
        %675 = vrot.lane.b32.xlu0 %v435, 80
        %v676 = vpop.permute.xlu0 %675
        %677 = vrot.lane.b32.xlu0 %v438, 80
        %v678 = vpop.permute.xlu0 %677
        %v679 = vsel %vm463, %v674, 0
        %v681 = vsel %vm463, %v676, 0
        %v683 = vsel %vm463, %v678, 0
        %685 = vmatpush.xpose.msra.mxu0 0.0
        %686 = vmatpush.xpose.msra.mxu0 0.0
        %687 = vmatpush.xpose.msra.mxu0 0.0
        %688 = vmatpush.xpose.msra.mxu0 0.0
        %689 = vmatpush.xpose.msra.mxu0 0.0
        %690 = vmatpush.xpose.msra.mxu0 0.0
        %691 = vmatpush.xpose.msra.mxu0 0.0
        %692 = vmatpush.xpose.msra.mxu0 0.0
        %693 = vmatpush.xpose.msra.mxu0 0.0
        %694 = vmatpush.xpose.msra.mxu0 0.0
        %695 = vmatpush.xpose.msra.mxu0 0.0
        %696 = vmatpush.xpose.msra.mxu0 0.0
        %697 = vmatpush.xpose.msra.mxu0 0.0
        %698 = vmatpush.xpose.msra.mxu0 0.0
        %699 = vmatpush.xpose.msra.mxu0 %v683
        %700 = vmatpush.xpose.msra.mxu0 %v681
        %701 = vmatmul.f32.gmra.mxu0 %v679
        %v702 = vpop.f32.mrf.mxu0
        %v703 = vadd.f32 0.0, %v702
        %704 = vdwg.mxu0
        %v705 = vsel %vm463, %v703, -inf
        %706 = vmax.xlane.f32.xlu0 %v705
        %v707 = vpop.xlane.xlu0 %706
        %v708 = vsub.f32 %v703, %v707
        %v709 = vmul.f32 %v708, 1.442695
        %v710 = vpow.pop %v709
        %v711 = vsel %vm463, %v710, 0.0
        %712 = vadd.xlane.f32.xlu0 %v711
        %v713 = vpop.xlane.xlu0 %712
        %v714 = vrcp.pop %v713
        %v715 = vmul.f32 %v710, %v714
        %716 = vrot.lane.b32.xlu0 %v458, 80
        %v717 = vpop.permute.xlu0 %716
        %718 = vrot.lane.b32.xlu0 %v461, 80
        %v719 = vpop.permute.xlu0 %718
        %v723 = vsel %vm463, %v715, 0
        %725 = vmatpush.msra.mxu0 0.0
        %726 = vmatpush.msra.mxu0 0.0
        %727 = vmatpush.msra.mxu0 0.0
        %728 = vmatpush.msra.mxu0 0.0
        %729 = vmatpush.msra.mxu0 0.0
        %730 = vmatpush.msra.mxu0 0.0
        %731 = vmatpush.msra.mxu0 0.0
        %732 = vmatpush.msra.mxu0 0.0
        %733 = vmatpush.msra.mxu0 0.0
        %734 = vmatpush.msra.mxu0 0.0
        %735 = vmatpush.msra.mxu0 0.0
        %736 = vmatpush.msra.mxu0 0.0
        %737 = vmatpush.msra.mxu0 0.0
        %738 = vmatpush.msra.mxu0 0.0
        %739 = vmatpush.msra.mxu0 %v719
        %740 = vmatpush.msra.mxu0 %v717
        %741 = vmatmul.f32.gmra.mxu0 %v723
        %v742 = vpop.f32.mrf.mxu0
        %v743 = vadd.f32 0.0, %v742
        %744 = vdwg.mxu0
        %746 = vrot.lane.b32.xlu0 %v599, 16
        %v747 = vpop.permute.xlu0 %746
        %750 = vrot.lane.b32.xlu0 %v671, 32
        %v751 = vpop.permute.xlu0 %750
        %754 = vrot.lane.b32.xlu0 %v743, 48
        %v755 = vpop.permute.xlu0 %754
        %v757 = vsel %vm463, %v525, %v747
        %v758 = vsel %vm410, %v757, %v751
        %vm759 = vcmask 392192
        %v760 = vsel %vm759, %v758, %v755
        %v761 = vld [vmem:[#allocation10] sm:$0xff]
        %v762 = vld [vmem:[#allocation10 + $0x8] sm:$0xff]
        %v763 = vld [vmem:[#allocation10 + $0x10] sm:$0xff]
        %v764 = vld [vmem:[#allocation10 + $0x18] sm:$0xff]
        %v765 = vld [vmem:[#allocation10 + $0x20] sm:$0xff]
        %v766 = vld [vmem:[#allocation10 + $0x28] sm:$0xff]
        %v767 = vld [vmem:[#allocation10 + $0x30] sm:$0xff]
        %v768 = vld [vmem:[#allocation10 + $0x38] sm:$0xff]
        %v770 = vperm.slane %v366, 0
        %vm772 = vcmask 523264
        %v774 = vsel %vm772, %v760, 0
        %776 = vmatpush.msra.mxu0 0.0
        %777 = vmatpush.msra.mxu0 0.0
        %778 = vmatpush.msra.mxu0 0.0
        %779 = vmatpush.msra.mxu0 0.0
        %780 = vmatpush.msra.mxu0 0.0
        %781 = vmatpush.msra.mxu0 0.0
        %782 = vmatpush.msra.mxu0 0.0
        %783 = vmatpush.msra.mxu0 0.0
        %784 = vmatpush.msra.mxu0 %v768
        %785 = vmatpush.msra.mxu0 %v767
        %786 = vmatpush.msra.mxu0 %v766
        %787 = vmatpush.msra.mxu0 %v765
        %788 = vmatpush.msra.mxu0 %v764
        %789 = vmatpush.msra.mxu0 %v763
        %790 = vmatpush.msra.mxu0 %v762
        %791 = vmatpush.msra.mxu0 %v761
        %792 = vmatmul.f32.gmra.mxu0 %v774
        %v793 = vpop.f32.mrf.mxu0
        %v794 = vadd.f32 %v770, %v793
        %795 = vdwg.mxu0
        %796 = vst [vmem:[%s359] sm:$0xff] %v794
        %s797 = sand.u32 %s171, 1
        %s798 = scalar_lea.sflag [#allocation4], %s797
        %s799 = sand.u32 %s171, 1
        %s800 = smul.addr %s799, 8
        %s801 = scalar_lea.vmem [#allocation11], %s800
        // Predicated region
        $region65: #{cross_mha.1} parent=43 // pred_check
          %p802 = pneg %p181
        $region66: #{cross_mha.1} parent=43 // pred_check_branch
          %804 = sbr.rel (%p802) target = $region68
        $region67: #{cross_mha.1} parent=43 // pred_region
          %806 = vsyncadd %s798, 0
          %s807 = smul.addr %s27, 8
          %s808 = scalar_lea.hbm %s6, %s807
          %s810 = sshll.u32 %s801, 4
          %s811 = int_to_ptr.vmem [resolvable:$true] %s810
          %s812 = sshll.u32 %s808, 4
          %s813 = int_to_ptr.hbm [resolvable:$true] %s812
          %815 = dma.vmem_to_hbm [thread:$0]  %s811, 128, %s813, %s798
        $region68: #{cross_mha.1} parent=43 // pred_fallthru
          _
      $region44: #{cross_mha.1} parent=5 // pred_fallthru
        _
      %p816 = scmp.le.s32.totalorder 2, %s22
      // Predicated region
      $region69: #{cross_mha.1} parent=5 // pred_check
        %p817 = pneg %p816
      $region70: #{cross_mha.1} parent=5 // pred_check_branch
        %819 = sbr.rel (%p817) target = $region72
      $region71: #{cross_mha.1} parent=5 // pred_region
        %s820 = ssub.s32 %s22, 2
        // Predicated region
        $region73: #{cross_mha.1} parent=71 // pred_check
          %p821 = pneg %p187
        $region74: #{cross_mha.1} parent=71 // pred_check_branch
          %823 = sbr.rel (%p821) target = $region76
        $region75: #{cross_mha.1} parent=71 // pred_region
          %s824 = sand.u32 %s172, 1
          %s825 = scalar_lea.sflag [#allocation4], %s824
          %s826 = sand.u32 %s172, 1
          %s827 = smul.addr %s826, 8
          %s828 = scalar_lea.vmem [#allocation11], %s827
          %830 = dma.done %s825, 128
        $region76: #{cross_mha.1} parent=71 // pred_fallthru
          _
      $region72: #{cross_mha.1} parent=5 // pred_fallthru
        _
    $region6: #{cross_mha.1} parent=1 // loop_footer
      %s26 = sadd.s32 1, %s22
    $region7: #{cross_mha.1} parent=1 // loop_footer_branch
      %21 = sbr.rel target = $region3
    $region8: #{cross_mha.1} parent=1 // loop_exit
      _
    %831 = vsyncpa [#allocation3], 1
    %s832 = scalar_lea.sflag [#allocation3], 1
    %833 = vsyncpa %s832, 1
    %834 = vsyncpa [#allocation6], 1
    %s835 = scalar_lea.sflag [#allocation6], 1
    %836 = vsyncpa %s835, 1
    %837 = vsyncpa [#allocation9], 1
    %838 = vsyncpa [#allocation4], 1
    %s839 = scalar_lea.sflag [#allocation4], 1
    %840 = vsyncpa %s839, 1

</llo_original>
